<compile_context>
chip_gen: v7x
topology: tpu7x:2x2x1
jax: 0.10.0
libtpu: 0.0.40
codegen_flags: <defaults>
</compile_context>

<pallas_src>
import jax
import jax.numpy as jnp
from jax.experimental import pallas as pl
from jax.experimental.pallas import tpu as pltpu


# Python float (NOT a jnp array) so the kernel does not capture a traced constant.
NEG_INF = float("-inf")


def _sent_maxpool_kernel(need_ref,   # SMEM (nb,) int32   -- scalar prefetch
                         full_ref,   # SMEM (nb,) int32   -- scalar prefetch
                         x_ref,      # VMEM (TB, TS, H)   -- streamed, native dtype
                         len_ref,    # VMEM (TB, 1) int32 -- resident over S
                         w_ref,      # VMEM (H, NS) f32   -- resident
                         b_ref,      # VMEM (1, NS) f32   -- resident
                         out_ref,    # VMEM (TB, NS) f32  -- resident over S
                         acc_ref):   # VMEM scratch (TB, H) f32 -- running max
    b = pl.program_id(0)
    s = pl.program_id(1)
    ns = pl.num_programs(1)
    TB, TS, H = x_ref.shape

    @pl.when(s == 0)
    def _init():
        acc_ref[...] = jnp.full(acc_ref.shape, NEG_INF, dtype=acc_ref.dtype)

    need = need_ref[b]
    full = full_ref[b]

    # Interior tiles: every row of this B-tile is fully valid -> mask-free max
    # (saves the per-element iota/compare/select on the bulk of the data).
    @pl.when(s < full)
    def _fast():
        xb = x_ref[...].astype(jnp.float32)
        acc_ref[...] = jnp.maximum(acc_ref[...], jnp.max(xb, axis=1))

    # Boundary tiles: mask with *global* positions (also covers Pallas tail
    # padding when S % TS != 0). Fully-padded tiles (s >= need) are skipped and
    # their x block was deduplicated in the index_map (no extra HBM traffic).
    @pl.when(jnp.logical_and(s >= full, s < need))
    def _masked():
        pos = jax.lax.broadcasted_iota(jnp.int32, (TB, TS, 1), 1) + s * TS
        valid = pos < len_ref[...][:, :, None]            # (TB, TS, 1)
        xb = x_ref[...].astype(jnp.float32)               # (TB, TS, H)
        acc_ref[...] = jnp.maximum(
            acc_ref[...], jnp.max(jnp.where(valid, xb, NEG_INF), axis=1))

    @pl.when(s == ns - 1)
    def _epilogue():
        # Tiny (TB,H)@(H,NS) matmul on the MXU, once per B-tile.
        out_ref[...] = (
            jnp.dot(acc_ref[...], w_ref[...], preferred_element_type=jnp.float32)
            + b_ref[...])


def _vmem_capacity_bytes():
    try:
        return int(pltpu.get_tpu_info().vmem_capacity_bytes)
    except Exception:
        return 128 * 1024 * 1024   # v5e / v6e physical VMEM (conservative default)


def _pick_tile(dim, target, align):
    """Full dim if it fits, else the largest multiple of `align` <= target."""
    if dim <= target:
        return dim
    return max(align, (target // align) * align)


def sent_maxpool_out(x_states, x_lengths, w_out, b_out, *, max_src_len=None):
    """x_states: [B, S, H] f32/bf16; x_lengths: [B] int; w_out: [NS, H] (PyTorch
    Linear weight); b_out: [NS]. Returns logits [B, NS] f32.

    max_src_len: optional *static* promise that no length exceeds it -- shrinks
    the S grid when batches are heavily padded (pure grid-step overhead saving).
    """
    B, S, H = x_states.shape
    NS = w_out.shape[0]

    # Stream x in its native dtype (bf16 halves HBM bytes); f32 math in-kernel.
    itemsize = jnp.dtype(x_states.dtype).itemsize
    lens = x_lengths.astype(jnp.int32)
    lens2d = lens.reshape(B, 1)
    w_t = jnp.transpose(w_out).astype(jnp.float32)        # (H, NS)
    b2d = b_out.astype(jnp.float32).reshape(1, NS)

    # ---- B tiling ----------------------------------------------------------
    # >= 2 B-tiles when B > 8 so the "parallel" axis can shard across v7x's TCs
    # (tb must be a multiple of 8 or equal B for the lens/out BlockSpecs).
    tb = 8 if B > 8 else B
    nb = pl.cdiv(B, tb)

    # ---- generation-aware S tiling -----------------------------------------
    vmem = _vmem_capacity_bytes()
    if vmem >= 96 * 1024 * 1024:           # v5e / v6e: 128 MiB physical VMEM
        x_buf_target = 16 * 1024 * 1024
        vmem_limit = 96 * 1024 * 1024
    else:                                  # v7x: 64 MiB physical VMEM
        x_buf_target = 12 * 1024 * 1024
        vmem_limit = 48 * 1024 * 1024

    # Sublane alignment follows dtype packing: f32 -> 8 rows, bf16 -> 16, int8 -> 32.
    align = 8 * max(1, 4 // itemsize)
    max_rows = max(align, x_buf_target // max(1, tb * H * itemsize))
    ts = _pick_tile(S, max_rows, align)

    s_eff = S if max_src_len is None else min(S, int(max_src_len))
    nst = max(1, pl.cdiv(s_eff, ts))

    # ---- per-B-tile scalar tables (scalar-prefetched into SMEM) ------------
    lens_hi = jnp.zeros((nb * tb,), jnp.int32).at[:B].set(lens)       # pad -> 0
    lens_lo = jnp.full((nb * tb,), S, jnp.int32).at[:B].set(lens)     # pad -> S
    tile_max = jnp.max(lens_hi.reshape(nb, tb), axis=1)
    tile_min = jnp.min(lens_lo.reshape(nb, tb), axis=1)
    # need >= 1 so the dedup clamp in the index_map stays in range.
    tile_need = jnp.clip((tile_max + ts - 1) // ts, 1, nst).astype(jnp.int32)
    tile_full = jnp.minimum(jnp.clip(tile_min // ts, 0, nst),
                            tile_need).astype(jnp.int32)

    grid_spec = pltpu.PrefetchScalarGridSpec(
        num_scalar_prefetch=2,
        grid=(nb, nst),
        in_specs=[
            # x: clamp the S block index so fully-padded tiles re-use the
            # previously fetched block (Pallas skips the duplicate DMA).
            pl.BlockSpec((tb, ts, H),
                         lambda b, s, need, full: (b, jnp.minimum(s, need[b] - 1), 0)),
            pl.BlockSpec((tb, 1), lambda b, s, need, full: (b, 0)),
            pl.BlockSpec((H, NS), lambda b, s, need, full: (0, 0)),
            pl.BlockSpec((1, NS), lambda b, s, need, full: (0, 0)),
        ],
        out_specs=pl.BlockSpec((tb, NS), lambda b, s, need, full: (b, 0)),
        scratch_shapes=[pltpu.VMEM((tb, H), jnp.float32)],
    )

    return pl.pallas_call(
        _sent_maxpool_kernel,
        out_shape=jax.ShapeDtypeStruct((B, NS), jnp.float32),
        grid_spec=grid_spec,
        compiler_params=pltpu.CompilerParams(
            dimension_semantics=("parallel", "arbitrary"),
            vmem_limit_bytes=vmem_limit,
        ),
    )(tile_need, tile_full, x_states, lens2d, w_t, b2d)


def reference(x_states, x_lengths, w_out, b_out):
    """Pure-JAX reference (intended semantics: pads -> -inf)."""
    B, S, H = x_states.shape
    pos = jnp.arange(S)[None, :]                          # (1, S)
    valid = pos < x_lengths[:, None]                      # (B, S)
    masked = jnp.where(valid[:, :, None], x_states.astype(jnp.float32), -jnp.inf)
    sent_vec = jnp.max(masked, axis=1)                    # (B, H)
    return jnp.dot(sent_vec, jnp.transpose(w_out).astype(jnp.float32),
                   precision=jax.lax.Precision.HIGHEST) + b_out.astype(jnp.float32)


if __name__ == "__main__":
    B, S, H, NUM_STYLES = 2, 8, 32, 4

    key = jax.random.PRNGKey(0)
    kx, kw, kb = jax.random.split(key, 3)

    x_states = jax.random.normal(kx, (B, S, H), dtype=jnp.float32)
    x_lengths = jnp.array([5, 8], dtype=jnp.int32)        # per-example valid lengths

    # Deterministic "xavier-like" init for nn.Linear(h_size, num_styles).
    limit = (6.0 / (H + NUM_STYLES)) ** 0.5
    w_out = jax.random.uniform(kw, (NUM_STYLES, H), minval=-limit, maxval=limit,
                               dtype=jnp.float32)
    b_out = jax.random.uniform(kb, (NUM_STYLES,), minval=-0.1, maxval=0.1,
                               dtype=jnp.float32)

    # f32 path.
    logits = sent_maxpool_out(x_states, x_lengths, w_out, b_out)
    jax.block_until_ready(logits)
    ref = reference(x_states, x_lengths, w_out, b_out)
    assert logits.shape == (B, NUM_STYLES)
    assert jnp.allclose(logits, ref, atol=1e-4, rtol=1e-4), (logits, ref)

    # bf16 streaming path (native-dtype streaming; kernel upcasts tiles to f32).
    x_bf16 = x_states.astype(jnp.bfloat16)
    logits_bf16 = sent_maxpool_out(x_bf16, x_lengths, w_out, b_out)
    jax.block_until_ready(logits_bf16)
    ref_bf16 = reference(x_bf16, x_lengths, w_out, b_out)
    assert jnp.allclose(logits_bf16, ref_bf16, atol=1e-4, rtol=1e-4), (logits_bf16, ref_bf16)

    print("KERNEL_OK")
</pallas_src>

<mosaic_0001>
module attributes {stable_mosaic.version = 11 : i64} {
  func.func @_sent_maxpool_kernel(%arg0: i32, %arg1: i32, %arg2: memref<1xi32, #tpu.memory_space<smem>>, %arg3: memref<1xi32, #tpu.memory_space<smem>>, %arg4: memref<2x8x32xf32, #tpu.memory_space<vmem>>, %arg5: memref<2x1xi32, #tpu.memory_space<vmem>>, %arg6: memref<32x4xf32, #tpu.memory_space<vmem>>, %arg7: memref<1x4xf32, #tpu.memory_space<vmem>>, %arg8: memref<2x4xf32, #tpu.memory_space<vmem>>, %arg9: memref<2x32xf32, #tpu.memory_space<vmem>>) attributes {dimension_semantics = [#tpu.dimension_semantics<parallel>, #tpu.dimension_semantics<arbitrary>], iteration_bounds = array<i64: 1, 1>, scalar_prefetch = 2 : i64, scratch_operands = 1 : i64, tpu.core_type = #tpu.core_type<tc>, window_params = [{transform_indices = @transform_0, window_bounds = array<i64: 2, 8, 32>}, {transform_indices = @transform_1, window_bounds = array<i64: 2, 1>}, {pipeline_mode = #tpu.pipeline_mode<synchronous>, transform_indices = @transform_2, window_bounds = array<i64: 32, 4>}, {pipeline_mode = #tpu.pipeline_mode<synchronous>, transform_indices = @transform_3, window_bounds = array<i64: 1, 4>}, {transform_indices = @transform_4, window_bounds = array<i64: 2, 4>}]} {
    %c0_i32 = arith.constant 0 : i32
    %0 = arith.cmpi eq, %arg1, %c0_i32 : i32
    %1 = arith.extui %0 : i1 to i32
    %c0_i32_0 = arith.constant 0 : i32
    %2 = arith.cmpi ne, %1, %c0_i32_0 : i32
    scf.if %2 {
      %cst = arith.constant 0xFF800000 : f32
      %18 = vector.broadcast %cst : f32 to vector<2x32xf32>
      %c0 = arith.constant 0 : index
      %c0_5 = arith.constant 0 : index
      %19 = vector.load %arg9[%c0, %c0_5] : memref<2x32xf32, #tpu.memory_space<vmem>>, vector<2x32xf32>
      tpu.vector_store %arg9[%c0, %c0_5], %18 {strides = array<i32>} : memref<2x32xf32, #tpu.memory_space<vmem>>, vector<2x32xf32>,
    } else {
    }
    %3 = arith.index_cast %arg0 : i32 to index
    %4 = memref.load %arg2[%3] : memref<1xi32, #tpu.memory_space<smem>>
    %5 = arith.index_cast %arg0 : i32 to index
    %6 = memref.load %arg3[%5] : memref<1xi32, #tpu.memory_space<smem>>
    %7 = arith.cmpi slt, %arg1, %6 : i32
    %8 = arith.extui %7 : i1 to i32
    %c0_i32_1 = arith.constant 0 : i32
    %9 = arith.cmpi ne, %8, %c0_i32_1 : i32
    scf.if %9 {
      %c0 = arith.constant 0 : index
      %c0_5 = arith.constant 0 : index
      %c0_6 = arith.constant 0 : index
      %18 = vector.load %arg4[%c0, %c0_5, %c0_6] : memref<2x8x32xf32, #tpu.memory_space<vmem>>, vector<2x8x32xf32>
      %c0_7 = arith.constant 0 : index
      %c0_8 = arith.constant 0 : index
      %19 = vector.load %arg9[%c0_7, %c0_8] : memref<2x32xf32, #tpu.memory_space<vmem>>, vector<2x32xf32>
      %cst = arith.constant dense<0xFF800000> : vector<2x32xf32>
      %20 = vector.multi_reduction <maximumf>, %18, %cst [1] : vector<2x8x32xf32> to vector<2x32xf32>
      %21 = arith.maximumf %19, %20 : vector<2x32xf32>
      %c0_9 = arith.constant 0 : index
      %c0_10 = arith.constant 0 : index
      %22 = vector.load %arg9[%c0_9, %c0_10] : memref<2x32xf32, #tpu.memory_space<vmem>>, vector<2x32xf32>
      tpu.vector_store %arg9[%c0_9, %c0_10], %21 {strides = array<i32>} : memref<2x32xf32, #tpu.memory_space<vmem>>, vector<2x32xf32>,
    } else {
    }
    %10 = arith.cmpi sge, %arg1, %6 : i32
    %11 = arith.cmpi slt, %arg1, %4 : i32
    %12 = arith.andi %10, %11 : i1
    %13 = arith.extui %12 : i1 to i32
    %c0_i32_2 = arith.constant 0 : i32
    %14 = arith.cmpi ne, %13, %c0_i32_2 : i32
    scf.if %14 {
      %18 = tpu.iota {dimensions = array<i32: 1>} : vector<2x8x1xi32>
      %c8_i32 = arith.constant 8 : i32
      %19 = arith.muli %arg1, %c8_i32 : i32
      %20 = vector.broadcast %19 : i32 to vector<2x8x1xi32>
      %21 = arith.addi %18, %20 : vector<2x8x1xi32>
      %c0 = arith.constant 0 : index
      %c0_5 = arith.constant 0 : index
      %22 = vector.load %arg5[%c0, %c0_5] : memref<2x1xi32, #tpu.memory_space<vmem>>, vector<2x1xi32>
      %23 = vector.shape_cast %22 : vector<2x1xi32> to vector<2x1x1xi32>
      %24 = vector.broadcast %23 : vector<2x1x1xi32> to vector<2x8x1xi32>
      %25 = arith.cmpi slt, %21, %24 : vector<2x8x1xi32>
      %c0_6 = arith.constant 0 : index
      %c0_7 = arith.constant 0 : index
      %c0_8 = arith.constant 0 : index
      %26 = vector.load %arg4[%c0_6, %c0_7, %c0_8] : memref<2x8x32xf32, #tpu.memory_space<vmem>>, vector<2x8x32xf32>
      %c0_9 = arith.constant 0 : index
      %c0_10 = arith.constant 0 : index
      %27 = vector.load %arg9[%c0_9, %c0_10] : memref<2x32xf32, #tpu.memory_space<vmem>>, vector<2x32xf32>
      %cst = arith.constant 0xFF800000 : f32
      %28 = vector.shape_cast %25 : vector<2x8x1xi1> to vector<2x8x1xi1>
      %29 = vector.broadcast %28 : vector<2x8x1xi1> to vector<2x8x32xi1>
      %30 = vector.broadcast %cst : f32 to vector<2x8x32xf32>
      %31 = arith.select %29, %26, %30 : vector<2x8x32xi1>, vector<2x8x32xf32>
      %cst_11 = arith.constant dense<0xFF800000> : vector<2x32xf32>
      %32 = vector.multi_reduction <maximumf>, %31, %cst_11 [1] : vector<2x8x32xf32> to vector<2x32xf32>
      %33 = arith.maximumf %27, %32 : vector<2x32xf32>
      %c0_12 = arith.constant 0 : index
      %c0_13 = arith.constant 0 : index
      %34 = vector.load %arg9[%c0_12, %c0_13] : memref<2x32xf32, #tpu.memory_space<vmem>>, vector<2x32xf32>
      tpu.vector_store %arg9[%c0_12, %c0_13], %33 {strides = array<i32>} : memref<2x32xf32, #tpu.memory_space<vmem>>, vector<2x32xf32>,
    } else {
    }
    %c0_i32_3 = arith.constant 0 : i32
    %15 = arith.cmpi eq, %arg1, %c0_i32_3 : i32
    %16 = arith.extui %15 : i1 to i32
    %c0_i32_4 = arith.constant 0 : i32
    %17 = arith.cmpi ne, %16, %c0_i32_4 : i32
    scf.if %17 {
      %c0 = arith.constant 0 : index
      %c0_5 = arith.constant 0 : index
      %18 = vector.load %arg9[%c0, %c0_5] : memref<2x32xf32, #tpu.memory_space<vmem>>, vector<2x32xf32>
      %c0_6 = arith.constant 0 : index
      %c0_7 = arith.constant 0 : index
      %19 = vector.load %arg6[%c0_6, %c0_7] : memref<32x4xf32, #tpu.memory_space<vmem>>, vector<32x4xf32>
      %cst = arith.constant dense<0.000000e+00> : vector<2x4xf32>
      %20 = tpu.matmul %18, %19, %cst {dimension_numbers = #tpu.dot_dimension_numbers<[1], [0], [0], [1], [0, 0, 1, 1], [], []>} : vector<2x32xf32>, vector<32x4xf32>, vector<2x4xf32> -> vector<2x4xf32>
      %c0_8 = arith.constant 0 : index
      %c0_9 = arith.constant 0 : index
      %21 = vector.load %arg7[%c0_8, %c0_9] : memref<1x4xf32, #tpu.memory_space<vmem>>, vector<1x4xf32>
      %22 = vector.broadcast %21 : vector<1x4xf32> to vector<2x4xf32>
      %23 = arith.addf %20, %22 : vector<2x4xf32>
      %c0_10 = arith.constant 0 : index
      %c0_11 = arith.constant 0 : index
      %24 = vector.load %arg8[%c0_10, %c0_11] : memref<2x4xf32, #tpu.memory_space<vmem>>, vector<2x4xf32>
      tpu.vector_store %arg8[%c0_10, %c0_11], %23 {strides = array<i32>} : memref<2x4xf32, #tpu.memory_space<vmem>>, vector<2x4xf32>,
    } else {
    }
    return
  }
  func.func @transform_0(%arg0: i32, %arg1: i32, %arg2: memref<1xi32, #tpu.memory_space<smem>>, %arg3: memref<1xi32, #tpu.memory_space<smem>>) -> (i32, i32, i32) {
    %0 = arith.index_cast %arg0 : i32 to index
    %1 = memref.load %arg2[%0] : memref<1xi32, #tpu.memory_space<smem>>
    %c1_i32 = arith.constant 1 : i32
    %2 = arith.subi %1, %c1_i32 : i32
    %3 = arith.minsi %arg1, %2 : i32
    %c0_i32 = arith.constant 0 : i32
    %c0_i32_0 = arith.constant 0 : i32
    return %arg0, %3, %c0_i32 : i32, i32, i32
  }
  func.func @transform_1(%arg0: i32, %arg1: i32, %arg2: memref<1xi32, #tpu.memory_space<smem>>, %arg3: memref<1xi32, #tpu.memory_space<smem>>) -> (i32, i32) {
    %c0_i32 = arith.constant 0 : i32
    %c0_i32_0 = arith.constant 0 : i32
    return %arg0, %c0_i32 : i32, i32
  }
  func.func @transform_2(%arg0: i32, %arg1: i32, %arg2: memref<1xi32, #tpu.memory_space<smem>>, %arg3: memref<1xi32, #tpu.memory_space<smem>>) -> (i32, i32) {
    %c0_i32 = arith.constant 0 : i32
    %c0_i32_0 = arith.constant 0 : i32
    %c0_i32_1 = arith.constant 0 : i32
    return %c0_i32, %c0_i32_0 : i32, i32
  }
  func.func @transform_3(%arg0: i32, %arg1: i32, %arg2: memref<1xi32, #tpu.memory_space<smem>>, %arg3: memref<1xi32, #tpu.memory_space<smem>>) -> (i32, i32) {
    %c0_i32 = arith.constant 0 : i32
    %c0_i32_0 = arith.constant 0 : i32
    %c0_i32_1 = arith.constant 0 : i32
    return %c0_i32, %c0_i32_0 : i32, i32
  }
  func.func @transform_4(%arg0: i32, %arg1: i32, %arg2: memref<1xi32, #tpu.memory_space<smem>>, %arg3: memref<1xi32, #tpu.memory_space<smem>>) -> (i32, i32) {
    %c0_i32 = arith.constant 0 : i32
    %c0_i32_0 = arith.constant 0 : i32
    return %arg0, %c0_i32 : i32, i32
  }
}

</mosaic_0001>

<llo_original>
// kernel: tpu_custom_call.1
$region0: #{tpu_custom_call.1}
  #allocation0 [shape = 'u32[]', space=smem, size = 0x4, offset = 0x4, fixed_abs, tag = 'smem constant byte address 0x4 - core index']
  #allocation1 [shape = 'u32[144,128]{1,0:T(1,128)}', space=vmem, size = 0x12000, scoped, tag = 'internal scratch']
  #allocation2 [shape = 'f32[2,32]{1,0:T(2,128)}', space=vmem, size = 0x400, scoped, tag = 'scratch operand']
  #allocation3 [shape = 's32[1]{0}', space=sflag, size = 0x4, scoped, tag = 'scoped memory for tpu_custom_call.1']
  #allocation4 [shape = 's32[1]{0:T(128)S(6)}', space=smem, size = 0x200, scoped, tag = 'prefetched SMEM operand 0']
  #allocation5 [shape = 's32[1]{0:T(128)S(6)}', space=smem, size = 0x200, scoped, tag = 'prefetched SMEM operand 1']
  %s0 = inlined_call_operand.<no memory space> [shape: s32[1], index: 0, kind: input, shape index: {}]
  %s1 = inlined_call_operand.<no memory space> [shape: s32[1], index: 1, kind: input, shape index: {}]
  %s2 = inlined_call_operand.hbm [shape: f32[2,8,32], index: 2, kind: input, shape index: {}]
  %s3 = inlined_call_operand.hbm [shape: s32[2,1], index: 3, kind: input, shape index: {}]
  %s4 = inlined_call_operand.hbm [shape: f32[32,4], index: 4, kind: input, shape index: {}]
  %s5 = inlined_call_operand.hbm [shape: f32[1,4], index: 5, kind: input, shape index: {}]
  %s6 = inlined_call_operand.hbm [shape: f32[2,4], index: 6, kind: output, shape index: {}]
  %s7 = sld [smem:[#allocation0]]
  $region58: #{tpu_custom_call.1} parent=0
    _
  %s9 = ssub.s32 1, %s7
  %s10 = scalar_select 0, %s9, %s7
  %11 = sst [smem:[#allocation4]] %s0
  %12 = sst [smem:[#allocation5]] %s1
  $region1: #{tpu_custom_call.1} parent=0
    #allocation6 [shape = 'u8[8192]{0}', space=vmem, size = 0x2000, scoped, tag = 'input window, operand 2, single buffered']
    #allocation7 [shape = 's32[1]{0}', space=sflag, size = 0x4, scoped, tag = 'scoped memory for tpu_custom_call.1']
    #allocation8 [shape = 's32[1]{0}', space=sflag, size = 0x4, scoped, tag = 'scoped memory for tpu_custom_call.1']
    #allocation9 [shape = 'u8[1024]{0}', space=vmem, size = 0x400, scoped, tag = 'input window, operand 3, single buffered']
    #allocation10 [shape = 's32[1]{0}', space=sflag, size = 0x4, scoped, tag = 'scoped memory for tpu_custom_call.1']
    #allocation11 [shape = 'u8[16384]{0}', space=vmem, size = 0x4000, scoped, tag = 'input window, operand 4, single buffered']
    #allocation12 [shape = 'u8[512]{0}', space=vmem, size = 0x400, scoped, tag = 'input window, operand 5, single buffered']
    #allocation13 [shape = 's32[1]{0}', space=sflag, size = 0x4, scoped, tag = 'scoped memory for tpu_custom_call.1']
    #allocation14 [shape = 'u8[1024]{0}', space=vmem, size = 0x400, scoped, tag = 'output window, operand 0, single buffered']
    %13 = vsyncpa [#allocation7], 0
    %14 = vsyncpa [#allocation10], 0
    %15 = vsyncpa [#allocation13], 0
    %16 = vsyncpa [#allocation8], 0
    // Predicated region
    $region2: #{tpu_custom_call.1} parent=1 // pred_check
      _
    $region3: #{tpu_custom_call.1} parent=1 // pred_check_branch
      %18 = sbr.rel (0) target = $region5
    $region4: #{tpu_custom_call.1} parent=1 // pred_region
      %s19 = sld [smem:[#allocation4]]
      %s20 = ssub.s32 %s19, 1
      %p21 = scmp.lt.s32.totalorder 0, %s20
      %s22 = scalar_select %p21, 0, %s20
      %s24 = ssub.s32 256, 256
      %25 = vsyncadd [#allocation7], %s24
      %s26 = smul.addr %s22, 128
      %s27 = scalar_lea.hbm %s2, %s26
      %s28 = sshll.u32 [#allocation6], 4
      %s29 = int_to_ptr.vmem [resolvable:$true] %s28
      %34 = dma.hbm_to_vmem [thread:$0]  %s27, 256, %s29, [#allocation7], 128, 128, 8
    $region5: #{tpu_custom_call.1} parent=1 // pred_fallthru
      _
    // Predicated region
    $region6: #{tpu_custom_call.1} parent=1 // pred_check
      _
    $region7: #{tpu_custom_call.1} parent=1 // pred_check_branch
      %36 = sbr.rel (0) target = $region9
    $region8: #{tpu_custom_call.1} parent=1 // pred_region
      %s38 = ssub.s32 32, 32
      %39 = vsyncadd [#allocation10], %s38
      %s41 = sshll.u32 [#allocation9], 4
      %s42 = int_to_ptr.vmem [resolvable:$true] %s41
      %44 = dma.hbm_to_vmem [thread:$0]  %s3, 32, %s42, [#allocation10]
    $region9: #{tpu_custom_call.1} parent=1 // pred_fallthru
      _
    // Predicated region
    $region10: #{tpu_custom_call.1} parent=1 // pred_check
      _
    $region11: #{tpu_custom_call.1} parent=1 // pred_check_branch
      %46 = sbr.rel (0) target = $region13
    $region12: #{tpu_custom_call.1} parent=1 // pred_region
      %s48 = ssub.s32 512, 512
      %49 = vsyncadd [#allocation10], %s48
      %s50 = sshll.u32 [#allocation11], 4
      %s51 = int_to_ptr.vmem [resolvable:$true] %s50
      %56 = dma.hbm_to_vmem [thread:$0]  %s4, 512, %s51, [#allocation10], 128, 128, 8
    $region13: #{tpu_custom_call.1} parent=1 // pred_fallthru
      _
    // Predicated region
    $region14: #{tpu_custom_call.1} parent=1 // pred_check
      _
    $region15: #{tpu_custom_call.1} parent=1 // pred_check_branch
      %58 = sbr.rel (0) target = $region17
    $region16: #{tpu_custom_call.1} parent=1 // pred_region
      %s60 = ssub.s32 16, 16
      %61 = vsyncadd [#allocation13], %s60
      %s63 = sshll.u32 [#allocation12], 4
      %s64 = int_to_ptr.vmem [resolvable:$true] %s63
      %66 = dma.hbm_to_vmem [thread:$0]  %s5, 16, %s64, [#allocation13]
    $region17: #{tpu_custom_call.1} parent=1 // pred_fallthru
      _
    // Predicated region
    $region18: #{tpu_custom_call.1} parent=1 // pred_check
      _
    $region19: #{tpu_custom_call.1} parent=1 // pred_check_branch
      %68 = sbr.rel (0) target = $region21
    $region20: #{tpu_custom_call.1} parent=1 // pred_region
      %69 = dma.done [#allocation7], 256
    $region21: #{tpu_custom_call.1} parent=1 // pred_fallthru
      _
    // Predicated region
    $region22: #{tpu_custom_call.1} parent=1 // pred_check
      _
    $region23: #{tpu_custom_call.1} parent=1 // pred_check_branch
      %71 = sbr.rel (0) target = $region25
    $region24: #{tpu_custom_call.1} parent=1 // pred_region
      %72 = dma.done [#allocation10], 32
    $region25: #{tpu_custom_call.1} parent=1 // pred_fallthru
      _
    // Predicated region
    $region26: #{tpu_custom_call.1} parent=1 // pred_check
      _
    $region27: #{tpu_custom_call.1} parent=1 // pred_check_branch
      %74 = sbr.rel (0) target = $region29
    $region28: #{tpu_custom_call.1} parent=1 // pred_region
      %75 = dma.done [#allocation10], 512
    $region29: #{tpu_custom_call.1} parent=1 // pred_fallthru
      _
    // Predicated region
    $region30: #{tpu_custom_call.1} parent=1 // pred_check
      _
    $region31: #{tpu_custom_call.1} parent=1 // pred_check_branch
      %77 = sbr.rel (0) target = $region33
    $region32: #{tpu_custom_call.1} parent=1 // pred_region
      %78 = dma.done [#allocation13], 16
    $region33: #{tpu_custom_call.1} parent=1 // pred_fallthru
      _
    %s79 = sld [smem:[#allocation4]]
    %s80 = ssub.s32 %s79, 1
    %p81 = scmp.lt.s32.totalorder 0, %s80
    %s82 = scalar_select %p81, 0, %s80
    %p83 = scmp.eq.s32.totalorder 0, 0
    // Predicated region
    $region34: #{tpu_custom_call.1} parent=1 // pred_check
      %p84 = pneg %p83
    $region35: #{tpu_custom_call.1} parent=1 // pred_check_branch
      %86 = sbr.rel (%p84) target = $region37
    $region36: #{tpu_custom_call.1} parent=1 // pred_region
      %vm87 = vcmask 254976
      %88 = vst.msk [vmem:[#allocation2] sm:$0x3] %vm87, -inf
    $region37: #{tpu_custom_call.1} parent=1 // pred_fallthru
      _
    %s89 = sld [smem:[#allocation4]]
    %s90 = sld [smem:[#allocation5]]
    %p91 = scmp.lt.s32.totalorder 0, %s90
    // Predicated region
    $region38: #{tpu_custom_call.1} parent=1 // pred_check
      %p92 = pneg %p91
    $region39: #{tpu_custom_call.1} parent=1 // pred_check_branch
      %94 = sbr.rel (%p92) target = $region41
    $region40: #{tpu_custom_call.1} parent=1 // pred_region
      %v95 = vld [vmem:[#allocation6] sm:$0xff]
      %v96 = vld [vmem:[#allocation6 + $0x8] sm:$0xff]
      %v97 = vld [vmem:[#allocation2] sm:$0x3]
      %vm98 = vcmask 261120
      %v99 = vsel %vm98, %v95, -inf
      %v100 = vrot.slane %v99, 4
      %v101 = vmax.f32 %v99, %v100
      %v102 = vrot.slane %v101, 2
      %v103 = vmax.f32 %v101, %v102
      %v104 = vrot.slane %v103, 1
      %v105 = vmax.f32 %v103, %v104
      %v106 = vsel %vm98, %v96, -inf
      %v107 = vrot.slane %v106, 4
      %v108 = vmax.f32 %v106, %v107
      %v109 = vrot.slane %v108, 2
      %v110 = vmax.f32 %v108, %v109
      %v111 = vrot.slane %v110, 1
      %v112 = vmax.f32 %v110, %v111
      %vm115 = vcmask 1041409
      %v116 = vsel %vm115, %v112, %v105
      %v118 = vmax.f32 %v97, %v116
      %vm119 = vcmask 254976
      %120 = vst.msk [vmem:[#allocation2] sm:$0x3] %vm119, %v118
    $region41: #{tpu_custom_call.1} parent=1 // pred_fallthru
      _
    %p121 = scmp.ge.s32.totalorder 0, %s90
    %p122 = scmp.lt.s32.totalorder 0, %s89
    %p123 = pnand %p121, %p122
    %p124 = pneg %p123
    // Predicated region
    $region42: #{tpu_custom_call.1} parent=1 // pred_check
      _
    $region43: #{tpu_custom_call.1} parent=1 // pred_check_branch
      %126 = sbr.rel (%p123) target = $region45
    $region44: #{tpu_custom_call.1} parent=1 // pred_region
      %v127 = vlaneseq
      %v128 = vshrl.u32 %v127, 7
      %s129 = smul.u32 0, 8
      %v130 = vstv %s129
      %v131 = vadd.s32 %v128, %v130
      %v132 = vld [vmem:[#allocation9] sm:$0x3]
      %v134 = vunpack.c.l.s4 1966171168
      %v135 = vunpack.c.0.s8 %v134
      %v136 = vlaneseq
      %v137 = vshrl.u32 %v136, 7
      %v138 = vsub.s32 %v135, %v137
      %v139 = vrot.slane %v132, %v138
      %v140 = vcombine.high %v139, %v139
      %v142 = vunpack.c.l.s4 1966171168
      %v143 = vunpack.c.0.s8 %v142
      %v144 = vlaneseq
      %v145 = vshrl.u32 %v144, 7
      %v146 = vsub.s32 %v143, %v145
      %v147 = vrot.slane %v139, %v146
      %v149 = vunpack.c.l.s4 1966171168
      %v150 = vunpack.c.0.s8 %v149
      %v151 = vlaneseq
      %v152 = vshrl.u32 %v151, 7
      %v153 = vsub.s32 %v150, %v152
      %v154 = vrot.slane %v140, %v153
      %v155 = vlaneseq
      %v156 = vshrl.u32 %v155, 7
      %v157 = vsub.s32 0, %v156
      %v158 = vrot.slane %v147, %v157
      %v159 = vlaneseq
      %v160 = vshrl.u32 %v159, 7
      %v161 = vsub.s32 0, %v160
      %v162 = vrot.slane %v154, %v161
      %vm163 = vcmp.lt.s32.totalorder %v131, %v158
      %vm164 = vcmp.lt.s32.totalorder %v131, %v162
      %v165 = vld [vmem:[#allocation6] sm:$0xff]
      %v166 = vld [vmem:[#allocation6 + $0x8] sm:$0xff]
      %v167 = vld [vmem:[#allocation2] sm:$0x3]
      %v168 = vsel %vm163, 1, 0
      %v169 = vsel %vm164, 1, 0
      %170 = vset.pattern.permute.xlu0 0
      %171 = vperm.xlu0 %170, %v168
      %v172 = vpop.permute.xlu0 %171
      %173 = vset.pattern.permute.xlu0 0
      %174 = vperm.xlu0 %173, %v169
      %v175 = vpop.permute.xlu0 %174
      %vm176 = vcmp.eq.s32.totalorder %v172, 1
      %vm177 = vcmp.eq.s32.totalorder %v175, 1
      %v178 = vsel %vm176, %v165, -inf
      %v179 = vsel %vm177, %v166, -inf
      %vm180 = vcmask 261120
      %v181 = vsel %vm180, %v178, -inf
      %v182 = vrot.slane %v181, 4
      %v183 = vmax.f32 %v181, %v182
      %v184 = vrot.slane %v183, 2
      %v185 = vmax.f32 %v183, %v184
      %v186 = vrot.slane %v185, 1
      %v187 = vmax.f32 %v185, %v186
      %v188 = vsel %vm180, %v179, -inf
      %v189 = vrot.slane %v188, 4
      %v190 = vmax.f32 %v188, %v189
      %v191 = vrot.slane %v190, 2
      %v192 = vmax.f32 %v190, %v191
      %v193 = vrot.slane %v192, 1
      %v194 = vmax.f32 %v192, %v193
      %vm197 = vcmask 1041409
      %v198 = vsel %vm197, %v194, %v187
      %v200 = vmax.f32 %v167, %v198
      %vm201 = vcmask 254976
      %202 = vst.msk [vmem:[#allocation2] sm:$0x3] %vm201, %v200
    $region45: #{tpu_custom_call.1} parent=1 // pred_fallthru
      _
    // Predicated region
    $region46: #{tpu_custom_call.1} parent=1 // pred_check
      %p203 = pneg %p83
    $region47: #{tpu_custom_call.1} parent=1 // pred_check_branch
      %205 = sbr.rel (%p203) target = $region49
    $region48: #{tpu_custom_call.1} parent=1 // pred_region
      %v206 = vld [vmem:[#allocation2] sm:$0x3]
      %v207 = vld [vmem:[#allocation11] sm:$0xff]
      %v208 = vld [vmem:[#allocation11 + $0x8] sm:$0xff]
      %v209 = vld [vmem:[#allocation11 + $0x10] sm:$0xff]
      %v210 = vld [vmem:[#allocation11 + $0x18] sm:$0xff]
      %v211 = vld [vmem:[#allocation12] sm:$0x1]
      %v213 = vlaneseq
      %v214 = vshrl.u32 %v213, 7
      %v215 = vsub.s32 0, %v214
      %v216 = vrot.slane %v211, %v215
      %vm218 = vcmask 261120
      %v220 = vsel %vm218, %v206, 0
      %222 = vmatprep.subr.mxu0 0.0
      %223 = vmatpush1.msra.mxu0 %v207
      %224 = vmatprep.subr.mxu0 0.0
      %225 = vmatpush1.msra.mxu0 %v208
      %226 = vmatprep.subr.mxu0 0.0
      %227 = vmatpush1.msra.mxu0 %v209
      %228 = vmatprep.subr.mxu0 0.0
      %229 = vmatpush1.msra.mxu0 %v210
      %230 = vmatprep.subr.mxu0 0.0
      %231 = vmatpush1.msra.mxu0 0.0
      %232 = vmatprep.subr.mxu0 0.0
      %233 = vmatpush1.msra.mxu0 0.0
      %234 = vmatprep.subr.mxu0 0.0
      %235 = vmatpush1.msra.mxu0 0.0
      %236 = vmatprep.subr.mxu0 0.0
      %237 = vmatpush1.msra.mxu0 0.0
      %238 = vmatprep.subr.mxu0 0.0
      %239 = vmatpush1.msra.mxu0 0.0
      %240 = vmatprep.subr.mxu0 0.0
      %241 = vmatpush1.msra.mxu0 0.0
      %242 = vmatprep.subr.mxu0 0.0
      %243 = vmatpush1.msra.mxu0 0.0
      %244 = vmatprep.subr.mxu0 0.0
      %245 = vmatpush1.msra.mxu0 0.0
      %246 = vmatprep.subr.mxu0 0.0
      %247 = vmatpush1.msra.mxu0 0.0
      %248 = vmatprep.subr.mxu0 0.0
      %249 = vmatpush1.msra.mxu0 0.0
      %250 = vmatprep.subr.mxu0 0.0
      %251 = vmatpush1.msra.mxu0 0.0
      %252 = vmatprep.subr.mxu0 0.0
      %253 = vmatpush1.msra.mxu0 0.0
      %254 = vmatprep.subr.mxu0 0.0
      %255 = vmatpush1.msra.mxu0 0.0
      %256 = vmatprep.subr.mxu0 0.0
      %257 = vmatpush1.msra.mxu0 0.0
      %258 = vmatprep.subr.mxu0 0.0
      %259 = vmatpush1.msra.mxu0 0.0
      %260 = vmatprep.subr.mxu0 0.0
      %261 = vmatpush1.msra.mxu0 0.0
      %262 = vmatprep.subr.mxu0 0.0
      %263 = vmatpush1.msra.mxu0 0.0
      %264 = vmatprep.subr.mxu0 0.0
      %265 = vmatpush1.msra.mxu0 0.0
      %266 = vmatprep.subr.mxu0 0.0
      %267 = vmatpush1.msra.mxu0 0.0
      %268 = vmatprep.subr.mxu0 0.0
      %269 = vmatpush1.msra.mxu0 0.0
      %270 = vmatprep.subr.mxu0 0.0
      %271 = vmatpush1.msra.mxu0 0.0
      %272 = vmatprep.subr.mxu0 0.0
      %273 = vmatpush1.msra.mxu0 0.0
      %274 = vmatprep.subr.mxu0 0.0
      %275 = vmatpush1.msra.mxu0 0.0
      %276 = vmatprep.subr.mxu0 0.0
      %277 = vmatpush1.msra.mxu0 0.0
      %278 = vmatprep.subr.mxu0 0.0
      %279 = vmatpush1.msra.mxu0 0.0
      %280 = vmatprep.subr.mxu0 0.0
      %281 = vmatpush1.msra.mxu0 0.0
      %282 = vmatprep.subr.mxu0 0.0
      %283 = vmatpush1.msra.mxu0 0.0
      %284 = vmatprep.subr.mxu0 0.0
      %285 = vmatpush1.msra.mxu0 0.0
      %286 = vmatprep.mubr.f32.mxu0 0.0
      %287 = vmatmul.mubr.f32.gmra.mrb[0].mxu0 %v220
      %v288 = vpop.f32.mrb[0].mxu0
      %v289 = vadd.f32 %v216, %v288
      %v290 = vpop.f32.mrb[0].mxu0
      %291 = vdwg.mxu0
      %vm292 = vcmask 25600
      %293 = vst.msk [vmem:[#allocation14] sm:$0x3] %vm292, %v289
    $region49: #{tpu_custom_call.1} parent=1 // pred_fallthru
      _
    // Predicated region
    $region50: #{tpu_custom_call.1} parent=1 // pred_check
      _
    $region51: #{tpu_custom_call.1} parent=1 // pred_check_branch
      %295 = sbr.rel (0) target = $region53
    $region52: #{tpu_custom_call.1} parent=1 // pred_region
      %s297 = ssub.s32 32, 32
      %298 = vsyncadd [#allocation8], %s297
      %s300 = sshll.u32 [#allocation14], 4
      %s301 = int_to_ptr.vmem [resolvable:$true] %s300
      %303 = dma.vmem_to_hbm [thread:$0]  %s301, 32, %s6, [#allocation8]
    $region53: #{tpu_custom_call.1} parent=1 // pred_fallthru
      _
    // Predicated region
    $region54: #{tpu_custom_call.1} parent=1 // pred_check
      _
    $region55: #{tpu_custom_call.1} parent=1 // pred_check_branch
      %305 = sbr.rel (0) target = $region57
    $region56: #{tpu_custom_call.1} parent=1 // pred_region
      %306 = dma.done [#allocation8], 32
    $region57: #{tpu_custom_call.1} parent=1 // pred_fallthru
      _
    %307 = vsyncpa [#allocation7], 1
    %308 = vsyncpa [#allocation10], 1
    %309 = vsyncpa [#allocation13], 1
    %310 = vsyncpa [#allocation8], 1

</llo_original>
